<compile_context>
chip_gen: v5e
topology: v5e:2x2
jax: 0.10.0
libtpu: 0.0.40
codegen_flags: <defaults>
</compile_context>

<pallas_src>
import math
import functools

import jax
import jax.numpy as jnp
import numpy as np
from jax import lax
from jax.experimental import pallas as pl
from jax.experimental.pallas import tpu as pltpu


def _attn_block_kernel(x_ref, wqkv_ref, bqkv_ref, wp_ref, bp_ref, o_ref,
                       qkv_scr, pv_scr, acc_ref, *,
                       heads_per_blk, head_size, q_tile):
    """Grid step (b, qi, hb): one head-block of one q-tile of one batch row.

    x_ref:     (1, T, C)         bf16  resident across (qi, hb) for batch b
    wqkv_ref:  (1, C, 3*bw)      bf16  [Wq | Wk | Wv] columns of this block
                                       (Wq pre-scaled by 1/sqrt(hs))
    bqkv_ref:  (1, 1, 3*bw)      f32
    wp_ref:    (1, bw, C)        bf16  head-block rows of W_proj
    bp_ref:    (1, C)            f32
    o_ref:     (1, tq, C)        output tile
    qkv_scr:   (n_blk, 3, T, bw) bf16  per-batch QKV projection cache
    pv_scr:    (tq, bw)          bf16  per-head PV results, lane-packed
    acc_ref:   (tq, C)           f32   output-projection accumulator
    """
    qi = pl.program_id(1)
    hb = pl.program_id(2)
    num_blk = pl.num_programs(2)
    bw = heads_per_blk * head_size

    # --- QKV projection, hoisted out of the q-tile loop ---------------------
    # One (T, C) @ (C, 3*bw) MXU pass per head-block per batch element.
    @pl.when(qi == 0)
    def _project():
        qkv = (jnp.dot(x_ref[0], wqkv_ref[0],
                       preferred_element_type=jnp.float32)
               + bqkv_ref[0]).astype(qkv_scr.dtype)            # (T, 3*bw)
        qkv_scr[hb, 0] = qkv[:, 0 * bw:1 * bw]                 # scaled q
        qkv_scr[hb, 1] = qkv[:, 1 * bw:2 * bw]                 # k
        qkv_scr[hb, 2] = qkv[:, 2 * bw:3 * bw]                 # v

    @pl.when(hb == 0)
    def _init():
        acc_ref[...] = jnp.zeros_like(acc_ref)

    row0 = pl.multiple_of(qi * q_tile, q_tile)
    q_blk = qkv_scr[hb, 0, pl.ds(row0, q_tile), :]             # (tq, bw)
    k_blk = qkv_scr[hb, 1]                                     # (T,  bw)
    v_blk = qkv_scr[hb, 2]                                     # (T,  bw)

    for i in range(heads_per_blk):                             # static unroll
        lo, hi = i * head_size, (i + 1) * head_size
        # Scores: contract the last dims of q and k (no explicit transpose);
        # the 1/sqrt(hs) scale is already folded into Wq / bq.
        s = lax.dot_general(q_blk[:, lo:hi], k_blk[:, lo:hi],
                            dimension_numbers=(((1,), (1,)), ((), ())),
                            preferred_element_type=jnp.float32)  # (tq, T)
        m = jnp.max(s, axis=-1, keepdims=True)
        p = jnp.exp(s - m)                                       # unnormalized
        l = jnp.sum(p, axis=-1, keepdims=True)
        pv = jnp.dot(p.astype(jnp.bfloat16), v_blk[:, lo:hi],
                     preferred_element_type=jnp.float32)          # (tq, hs)
        # Deferred softmax normalization: divide the (tq, hs) PV tile instead
        # of the (tq, T) probability tile (reciprocal runs on the EUP slot).
        pv = pv * pl.reciprocal(l, approx=True)
        pv_scr[:, lo:hi] = pv.astype(pv_scr.dtype)

    # Accumulate this head-block through its rows of W_proj: one K = bw
    # (>= 128) matmul and one (tq, C) f32 RMW per block.
    acc_ref[...] += jnp.dot(pv_scr[...], wp_ref[0],
                            preferred_element_type=jnp.float32)   # (tq, C)

    @pl.when(hb == num_blk - 1)
    def _finalize():
        o_ref[0] = (acc_ref[...] + bp_ref[...]).astype(o_ref.dtype)


def acausal_self_attention(x, w_qkv, b_qkv, w_proj, b_proj, *, n_heads,
                           q_tile=None):
    """x: (B, T, C).  Weights in [in, out] layout (nn.Linear pre-transposed)."""
    B, T, C = x.shape
    H = n_heads
    assert C % H == 0, "n_embed must be divisible by n_heads"
    hs = C // H
    scale = 1.0 / math.sqrt(hs)

    # Head-block size: largest divisor of H whose lane width HB*hs fills (but
    # does not exceed) the 256-deep MXU on v6e/v7x.
    hb_size = 1
    for cand in range(H, 0, -1):
        if H % cand == 0 and cand * hs <= 256:
            hb_size = cand
            break
    n_blk = H // hb_size
    bw = hb_size * hs                          # lane width of one head block

    # q-tile: bounds the (tq, T) score tile; whole sequence for short T.
    if q_tile is None:
        q_tile = T
        for cand in (512, 256, 128):
            if T > cand and T % cand == 0:
                q_tile = cand
                break
    assert q_tile == T or (T % q_tile == 0 and q_tile % 8 == 0)
    n_q = T // q_tile

    # --- Host-side re-layout -------------------------------------------------
    # Per-head-block weight slabs [Wq | Wk | Wv], bf16 for the MXU.  The
    # 1/sqrt(hs) softmax scale is folded into Wq / bq (zero runtime cost).
    def col_blocks(w):                         # (C, C) -> (n_blk, C, bw)
        return jnp.transpose(w.reshape(C, n_blk, bw), (1, 0, 2))

    def bias_blocks(b):                        # (C,)   -> (n_blk, 1, bw)
        return b.reshape(n_blk, 1, bw)

    w_qkv_blk = jnp.concatenate(
        [col_blocks(w_qkv[:, 0 * C:1 * C] * scale),
         col_blocks(w_qkv[:, 1 * C:2 * C]),
         col_blocks(w_qkv[:, 2 * C:3 * C])], axis=-1).astype(jnp.bfloat16)
    b_qkv_blk = jnp.concatenate(
        [bias_blocks(b_qkv[0 * C:1 * C] * scale),
         bias_blocks(b_qkv[1 * C:2 * C]),
         bias_blocks(b_qkv[2 * C:3 * C])], axis=-1).astype(jnp.float32)
    w_proj_blk = w_proj.reshape(n_blk, bw, C).astype(jnp.bfloat16)
    b_proj_row = b_proj.reshape(1, C).astype(jnp.float32)
    x_bf16 = x.astype(jnp.bfloat16)            # halve x DMA / VMEM tiles

    kernel = functools.partial(_attn_block_kernel, heads_per_blk=hb_size,
                               head_size=hs, q_tile=q_tile)

    # Advisory cost estimate (includes per-(batch, q-tile) weight re-reads).
    out_bytes = x.dtype.itemsize
    flops = (2 * B * T * C * 3 * C             # QKV projection
             + 4 * B * H * T * T * hs          # q@k^T + p@v
             + 2 * B * T * C * C)              # output projection
    transcendentals = B * H * T * T            # exp
    bytes_accessed = (B * T * C * 2 + B * T * C * out_bytes
                      + B * n_q * 4 * C * C * 2 + B * n_q * 4 * C * 4)

    # Generation-aware VMEM budget: tiles + weights + scratch + working set,
    # capped at 85% of the physical VMEM of whatever chip we are on.
    est = (2 * T * C * 2                                           # x (db)
           + 2 * q_tile * C * out_bytes                            # out (db)
           + 2 * (3 * C * bw * 2 + 3 * bw * 4 + bw * C * 2 + C * 4)  # weights
           + n_blk * 3 * T * bw * 2                                # QKV cache
           + q_tile * bw * 2 + q_tile * C * 4                      # pv + acc
           + 4 * q_tile * T * 4 + 4 * T * bw * 2                   # working set
           + (4 << 20))                                            # headroom
    try:
        phys = int(getattr(pltpu.get_tpu_info(), "vmem_capacity_bytes",
                           64 << 20))
    except Exception:
        phys = 64 << 20
    cap = max(int(phys * 0.85), 16 << 20)
    vmem_limit = int(min(max(est, 32 << 20), cap))

    return pl.pallas_call(
        kernel,
        out_shape=jax.ShapeDtypeStruct((B, T, C), x.dtype),
        grid=(B, n_q, n_blk),
        in_specs=[
            pl.BlockSpec((1, T, C), lambda b, q, h: (b, 0, 0)),        # x
            pl.BlockSpec((1, C, 3 * bw), lambda b, q, h: (h, 0, 0)),   # Wqkv
            pl.BlockSpec((1, 1, 3 * bw), lambda b, q, h: (h, 0, 0)),   # bqkv
            pl.BlockSpec((1, bw, C), lambda b, q, h: (h, 0, 0)),       # Wproj
            pl.BlockSpec((1, C), lambda b, q, h: (0, 0)),              # bproj
        ],
        out_specs=pl.BlockSpec((1, q_tile, C), lambda b, q, h: (b, q, 0)),
        scratch_shapes=[
            pltpu.VMEM((n_blk, 3, T, bw), jnp.bfloat16),   # QKV cache
            pltpu.VMEM((q_tile, bw), jnp.bfloat16),        # per-block PV pack
            pltpu.VMEM((q_tile, C), jnp.float32),          # output accumulator
        ],
        compiler_params=pltpu.CompilerParams(
            dimension_semantics=("parallel", "arbitrary", "arbitrary"),
            vmem_limit_bytes=vmem_limit),
        cost_estimate=pl.CostEstimate(
            flops=flops, transcendentals=transcendentals,
            bytes_accessed=bytes_accessed),
    )(x_bf16, w_qkv_blk, b_qkv_blk, w_proj_blk, b_proj_row)


def _reference(x, w_qkv, b_qkv, w_proj, b_proj, *, n_heads):
    """Pure-JAX f32 reference mirroring the PyTorch forward (dropout = id)."""
    B, T, C = x.shape
    hs = C // n_heads
    qkv = x @ w_qkv + b_qkv                                     # (B, T, 3C)
    q, k, v = jnp.split(qkv, 3, axis=2)

    def to_heads(z):
        return z.reshape(B, T, n_heads, hs).transpose(0, 2, 1, 3)  # (B,H,T,hs)

    q, k, v = map(to_heads, (q, k, v))
    w = jnp.einsum("bhqd,bhkd->bhqk", q, k) * (1.0 / math.sqrt(hs))
    w = jax.nn.softmax(w, axis=-1)
    out = jnp.einsum("bhqk,bhkd->bhqd", w, v)
    out = out.transpose(0, 2, 1, 3).reshape(B, T, C)
    return out @ w_proj + b_proj


def _run_case(key, B, T, C, H, q_tile=None):
    kx, k1, k2, k3, k4 = jax.random.split(key, 5)
    x = jax.random.normal(kx, (B, T, C), dtype=jnp.float32)
    # Deterministic parameters ([in, out] layout), cfg.bias = True.
    w_qkv = jax.random.normal(k1, (C, 3 * C), dtype=jnp.float32) * 0.02
    b_qkv = jax.random.normal(k2, (3 * C,), dtype=jnp.float32) * 0.02
    w_proj = jax.random.normal(k3, (C, C), dtype=jnp.float32) * 0.02
    b_proj = jax.random.normal(k4, (C,), dtype=jnp.float32) * 0.02

    out = acausal_self_attention(x, w_qkv, b_qkv, w_proj, b_proj,
                                 n_heads=H, q_tile=q_tile)
    out = jax.block_until_ready(out)
    ref = _reference(x, w_qkv, b_qkv, w_proj, b_proj, n_heads=H)
    # bf16 MXU operands + approx reciprocal -> loosened tolerance vs f32 ref.
    np.testing.assert_allclose(np.asarray(out), np.asarray(ref),
                               rtol=2e-2, atol=5e-3)


if __name__ == "__main__":
    key = jax.random.PRNGKey(0)
    k0, k1 = jax.random.split(key)
    # Small config consistent with the module (single head-block, single tile).
    _run_case(k0, B=2, T=8, C=32, H=4)
    # Slightly larger config exercising multi-head-block + multi-q-tile paths.
    _run_case(k1, B=2, T=32, C=512, H=8, q_tile=16)
    print("KERNEL_OK")
</pallas_src>

<mosaic_0001>
module attributes {stable_mosaic.version = 11 : i64} {
  func.func @_attn_block_kernel(%arg0: i32, %arg1: i32, %arg2: i32, %arg3: memref<1x8x32xbf16, #tpu.memory_space<vmem>>, %arg4: memref<1x32x96xbf16, #tpu.memory_space<vmem>>, %arg5: memref<1x1x96xf32, #tpu.memory_space<vmem>>, %arg6: memref<1x32x32xbf16, #tpu.memory_space<vmem>>, %arg7: memref<1x32xf32, #tpu.memory_space<vmem>>, %arg8: memref<1x8x32xf32, #tpu.memory_space<vmem>>, %arg9: memref<1x3x8x32xbf16, #tpu.memory_space<vmem>>, %arg10: memref<8x32xbf16, #tpu.memory_space<vmem>>, %arg11: memref<8x32xf32, #tpu.memory_space<vmem>>) attributes {dimension_semantics = [#tpu.dimension_semantics<parallel>, #tpu.dimension_semantics<arbitrary>, #tpu.dimension_semantics<arbitrary>], iteration_bounds = array<i64: 2, 1, 1>, scalar_prefetch = 0 : i64, scratch_operands = 3 : i64, tpu.core_type = #tpu.core_type<tc>, window_params = [{transform_indices = @transform_0, window_bounds = array<i64: 1, 8, 32>}, {transform_indices = @transform_1, window_bounds = array<i64: 1, 32, 96>}, {transform_indices = @transform_2, window_bounds = array<i64: 1, 1, 96>}, {transform_indices = @transform_3, window_bounds = array<i64: 1, 32, 32>}, {pipeline_mode = #tpu.pipeline_mode<synchronous>, transform_indices = @transform_4, window_bounds = array<i64: 1, 32>}, {transform_indices = @transform_5, window_bounds = array<i64: 1, 8, 32>}]} {
    %c0_i32 = arith.constant 0 : i32
    %0 = arith.cmpi eq, %arg1, %c0_i32 : i32
    %1 = arith.extui %0 : i1 to i32
    %c0_i32_0 = arith.constant 0 : i32
    %2 = arith.cmpi ne, %1, %c0_i32_0 : i32
    scf.if %2 {
      %c0_40 = arith.constant 0 : index
      %c0_41 = arith.constant 0 : index
      %c0_42 = arith.constant 0 : index
      %100 = vector.load %arg3[%c0_40, %c0_41, %c0_42] : memref<1x8x32xbf16, #tpu.memory_space<vmem>>, vector<1x8x32xbf16>
      %101 = vector.shape_cast %100 : vector<1x8x32xbf16> to vector<8x32xbf16>
      %c0_43 = arith.constant 0 : index
      %c0_44 = arith.constant 0 : index
      %c0_45 = arith.constant 0 : index
      %102 = vector.load %arg4[%c0_43, %c0_44, %c0_45] : memref<1x32x96xbf16, #tpu.memory_space<vmem>>, vector<1x32x96xbf16>
      %103 = vector.shape_cast %102 : vector<1x32x96xbf16> to vector<32x96xbf16>
      %cst_46 = arith.constant dense<0.000000e+00> : vector<8x96xf32>
      %104 = tpu.matmul %101, %103, %cst_46 {dimension_numbers = #tpu.dot_dimension_numbers<[1], [0], [0], [1], [0, 0, 1, 1], [], []>} : vector<8x32xbf16>, vector<32x96xbf16>, vector<8x96xf32> -> vector<8x96xf32>
      %c0_47 = arith.constant 0 : index
      %c0_48 = arith.constant 0 : index
      %c0_49 = arith.constant 0 : index
      %105 = vector.load %arg5[%c0_47, %c0_48, %c0_49] : memref<1x1x96xf32, #tpu.memory_space<vmem>>, vector<1x1x96xf32>
      %106 = vector.shape_cast %105 : vector<1x1x96xf32> to vector<1x96xf32>
      %107 = vector.broadcast %106 : vector<1x96xf32> to vector<8x96xf32>
      %108 = arith.addf %104, %107 : vector<8x96xf32>
      %109 = arith.truncf %108 : vector<8x96xf32> to vector<8x96xbf16>
      %110 = vector.extract_strided_slice %109 {offsets = [0, 0], sizes = [8, 32], strides = [1, 1]} : vector<8x96xbf16> to vector<8x32xbf16>
      %111 = arith.index_cast %arg2 : i32 to index
      %c0_50 = arith.constant 0 : index
      %c0_51 = arith.constant 0 : index
      %c0_52 = arith.constant 0 : index
      %112 = vector.load %arg9[%111, %c0_50, %c0_51, %c0_52] : memref<1x3x8x32xbf16, #tpu.memory_space<vmem>>, vector<1x1x8x32xbf16>
      %113 = vector.shape_cast %112 : vector<1x1x8x32xbf16> to vector<8x32xbf16>
      %114 = vector.shape_cast %110 : vector<8x32xbf16> to vector<1x1x8x32xbf16>
      tpu.vector_store %arg9[%111, %c0_50, %c0_51, %c0_52], %114 {strides = array<i32>} : memref<1x3x8x32xbf16, #tpu.memory_space<vmem>>, vector<1x1x8x32xbf16>,
      %115 = vector.extract_strided_slice %109 {offsets = [0, 32], sizes = [8, 32], strides = [1, 1]} : vector<8x96xbf16> to vector<8x32xbf16>
      %116 = arith.index_cast %arg2 : i32 to index
      %c1_53 = arith.constant 1 : index
      %c0_54 = arith.constant 0 : index
      %c0_55 = arith.constant 0 : index
      %117 = vector.load %arg9[%116, %c1_53, %c0_54, %c0_55] : memref<1x3x8x32xbf16, #tpu.memory_space<vmem>>, vector<1x1x8x32xbf16>
      %118 = vector.shape_cast %117 : vector<1x1x8x32xbf16> to vector<8x32xbf16>
      %119 = vector.shape_cast %115 : vector<8x32xbf16> to vector<1x1x8x32xbf16>
      tpu.vector_store %arg9[%116, %c1_53, %c0_54, %c0_55], %119 {strides = array<i32>} : memref<1x3x8x32xbf16, #tpu.memory_space<vmem>>, vector<1x1x8x32xbf16>,
      %120 = vector.extract_strided_slice %109 {offsets = [0, 64], sizes = [8, 32], strides = [1, 1]} : vector<8x96xbf16> to vector<8x32xbf16>
      %121 = arith.index_cast %arg2 : i32 to index
      %c2_56 = arith.constant 2 : index
      %c0_57 = arith.constant 0 : index
      %c0_58 = arith.constant 0 : index
      %122 = vector.load %arg9[%121, %c2_56, %c0_57, %c0_58] : memref<1x3x8x32xbf16, #tpu.memory_space<vmem>>, vector<1x1x8x32xbf16>
      %123 = vector.shape_cast %122 : vector<1x1x8x32xbf16> to vector<8x32xbf16>
      %124 = vector.shape_cast %120 : vector<8x32xbf16> to vector<1x1x8x32xbf16>
      tpu.vector_store %arg9[%121, %c2_56, %c0_57, %c0_58], %124 {strides = array<i32>} : memref<1x3x8x32xbf16, #tpu.memory_space<vmem>>, vector<1x1x8x32xbf16>,
    } else {
    }
    %c0_i32_1 = arith.constant 0 : i32
    %3 = arith.cmpi eq, %arg2, %c0_i32_1 : i32
    %4 = arith.extui %3 : i1 to i32
    %c0_i32_2 = arith.constant 0 : i32
    %5 = arith.cmpi ne, %4, %c0_i32_2 : i32
    scf.if %5 {
      %cst_40 = arith.constant 0.000000e+00 : f32
      %100 = vector.broadcast %cst_40 : f32 to vector<8x32xf32>
      %c0_41 = arith.constant 0 : index
      %c0_42 = arith.constant 0 : index
      %101 = vector.load %arg11[%c0_41, %c0_42] : memref<8x32xf32, #tpu.memory_space<vmem>>, vector<8x32xf32>
      tpu.vector_store %arg11[%c0_41, %c0_42], %100 {strides = array<i32>} : memref<8x32xf32, #tpu.memory_space<vmem>>, vector<8x32xf32>,
    } else {
    }
    %c8_i32 = arith.constant 8 : i32
    %6 = arith.muli %arg1, %c8_i32 : i32
    %7 = tpu.assume_multiple %6, 8 : i32
    %8 = arith.index_cast %arg2 : i32 to index
    %c0 = arith.constant 0 : index
    %9 = arith.index_cast %7 : i32 to index
    %c0_3 = arith.constant 0 : index
    %10 = vector.load %arg9[%8, %c0, %9, %c0_3] : memref<1x3x8x32xbf16, #tpu.memory_space<vmem>>, vector<1x1x8x32xbf16>
    %11 = vector.shape_cast %10 : vector<1x1x8x32xbf16> to vector<8x32xbf16>
    %12 = arith.index_cast %arg2 : i32 to index
    %c1 = arith.constant 1 : index
    %c0_4 = arith.constant 0 : index
    %c0_5 = arith.constant 0 : index
    %13 = vector.load %arg9[%12, %c1, %c0_4, %c0_5] : memref<1x3x8x32xbf16, #tpu.memory_space<vmem>>, vector<1x1x8x32xbf16>
    %14 = vector.shape_cast %13 : vector<1x1x8x32xbf16> to vector<8x32xbf16>
    %15 = arith.index_cast %arg2 : i32 to index
    %c2 = arith.constant 2 : index
    %c0_6 = arith.constant 0 : index
    %c0_7 = arith.constant 0 : index
    %16 = vector.load %arg9[%15, %c2, %c0_6, %c0_7] : memref<1x3x8x32xbf16, #tpu.memory_space<vmem>>, vector<1x1x8x32xbf16>
    %17 = vector.shape_cast %16 : vector<1x1x8x32xbf16> to vector<8x32xbf16>
    %18 = vector.extract_strided_slice %11 {offsets = [0, 0], sizes = [8, 8], strides = [1, 1]} : vector<8x32xbf16> to vector<8x8xbf16>
    %19 = vector.extract_strided_slice %14 {offsets = [0, 0], sizes = [8, 8], strides = [1, 1]} : vector<8x32xbf16> to vector<8x8xbf16>
    %cst = arith.constant dense<0.000000e+00> : vector<8x8xf32>
    %20 = tpu.matmul %18, %19, %cst {dimension_numbers = #tpu.dot_dimension_numbers<[1], [1], [0], [0], [0, 0, 1, 0], [], []>} : vector<8x8xbf16>, vector<8x8xbf16>, vector<8x8xf32> -> vector<8x8xf32>
    %cst_8 = arith.constant dense<0xFF800000> : vector<8xf32>
    %21 = vector.multi_reduction <maximumf>, %20, %cst_8 [1] : vector<8x8xf32> to vector<8xf32>
    %22 = vector.shape_cast %21 : vector<8xf32> to vector<8x1xf32>
    %23 = vector.broadcast %22 : vector<8x1xf32> to vector<8x8xf32>
    %24 = arith.subf %20, %23 : vector<8x8xf32>
    %25 = math.exp %24 : vector<8x8xf32>
    %cst_9 = arith.constant dense<0.000000e+00> : vector<8xf32>
    %26 = vector.multi_reduction <add>, %25, %cst_9 [1] : vector<8x8xf32> to vector<8xf32>
    %27 = vector.shape_cast %26 : vector<8xf32> to vector<8x1xf32>
    %28 = arith.truncf %25 : vector<8x8xf32> to vector<8x8xbf16>
    %29 = vector.extract_strided_slice %17 {offsets = [0, 0], sizes = [8, 8], strides = [1, 1]} : vector<8x32xbf16> to vector<8x8xbf16>
    %cst_10 = arith.constant dense<0.000000e+00> : vector<8x8xf32>
    %30 = tpu.matmul %28, %29, %cst_10 {dimension_numbers = #tpu.dot_dimension_numbers<[1], [0], [0], [1], [0, 0, 1, 1], [], []>} : vector<8x8xbf16>, vector<8x8xbf16>, vector<8x8xf32> -> vector<8x8xf32>
    %31 = tpu.reciprocal %27 {approx = true} : vector<8x1xf32> -> vector<8x1xf32>
    %32 = vector.broadcast %31 : vector<8x1xf32> to vector<8x8xf32>
    %33 = arith.mulf %30, %32 : vector<8x8xf32>
    %34 = arith.truncf %33 : vector<8x8xf32> to vector<8x8xbf16>
    %c0_11 = arith.constant 0 : index
    %c0_12 = arith.constant 0 : index
    %35 = vector.load %arg10[%c0_11, %c0_12] : memref<8x32xbf16, #tpu.memory_space<vmem>>, vector<8x8xbf16>
    tpu.vector_store %arg10[%c0_11, %c0_12], %34 {strides = array<i32>} : memref<8x32xbf16, #tpu.memory_space<vmem>>, vector<8x8xbf16>,
    %36 = vector.extract_strided_slice %11 {offsets = [0, 8], sizes = [8, 8], strides = [1, 1]} : vector<8x32xbf16> to vector<8x8xbf16>
    %37 = vector.extract_strided_slice %14 {offsets = [0, 8], sizes = [8, 8], strides = [1, 1]} : vector<8x32xbf16> to vector<8x8xbf16>
    %cst_13 = arith.constant dense<0.000000e+00> : vector<8x8xf32>
    %38 = tpu.matmul %36, %37, %cst_13 {dimension_numbers = #tpu.dot_dimension_numbers<[1], [1], [0], [0], [0, 0, 1, 0], [], []>} : vector<8x8xbf16>, vector<8x8xbf16>, vector<8x8xf32> -> vector<8x8xf32>
    %cst_14 = arith.constant dense<0xFF800000> : vector<8xf32>
    %39 = vector.multi_reduction <maximumf>, %38, %cst_14 [1] : vector<8x8xf32> to vector<8xf32>
    %40 = vector.shape_cast %39 : vector<8xf32> to vector<8x1xf32>
    %41 = vector.broadcast %40 : vector<8x1xf32> to vector<8x8xf32>
    %42 = arith.subf %38, %41 : vector<8x8xf32>
    %43 = math.exp %42 : vector<8x8xf32>
    %cst_15 = arith.constant dense<0.000000e+00> : vector<8xf32>
    %44 = vector.multi_reduction <add>, %43, %cst_15 [1] : vector<8x8xf32> to vector<8xf32>
    %45 = vector.shape_cast %44 : vector<8xf32> to vector<8x1xf32>
    %46 = arith.truncf %43 : vector<8x8xf32> to vector<8x8xbf16>
    %47 = vector.extract_strided_slice %17 {offsets = [0, 8], sizes = [8, 8], strides = [1, 1]} : vector<8x32xbf16> to vector<8x8xbf16>
    %cst_16 = arith.constant dense<0.000000e+00> : vector<8x8xf32>
    %48 = tpu.matmul %46, %47, %cst_16 {dimension_numbers = #tpu.dot_dimension_numbers<[1], [0], [0], [1], [0, 0, 1, 1], [], []>} : vector<8x8xbf16>, vector<8x8xbf16>, vector<8x8xf32> -> vector<8x8xf32>
    %49 = tpu.reciprocal %45 {approx = true} : vector<8x1xf32> -> vector<8x1xf32>
    %50 = vector.broadcast %49 : vector<8x1xf32> to vector<8x8xf32>
    %51 = arith.mulf %48, %50 : vector<8x8xf32>
    %52 = arith.truncf %51 : vector<8x8xf32> to vector<8x8xbf16>
    %c0_17 = arith.constant 0 : index
    %c8 = arith.constant 8 : index
    %53 = vector.load %arg10[%c0_17, %c8] : memref<8x32xbf16, #tpu.memory_space<vmem>>, vector<8x8xbf16>
    tpu.vector_store %arg10[%c0_17, %c8], %52 {strides = array<i32>} : memref<8x32xbf16, #tpu.memory_space<vmem>>, vector<8x8xbf16>,
    %54 = vector.extract_strided_slice %11 {offsets = [0, 16], sizes = [8, 8], strides = [1, 1]} : vector<8x32xbf16> to vector<8x8xbf16>
    %55 = vector.extract_strided_slice %14 {offsets = [0, 16], sizes = [8, 8], strides = [1, 1]} : vector<8x32xbf16> to vector<8x8xbf16>
    %cst_18 = arith.constant dense<0.000000e+00> : vector<8x8xf32>
    %56 = tpu.matmul %54, %55, %cst_18 {dimension_numbers = #tpu.dot_dimension_numbers<[1], [1], [0], [0], [0, 0, 1, 0], [], []>} : vector<8x8xbf16>, vector<8x8xbf16>, vector<8x8xf32> -> vector<8x8xf32>
    %cst_19 = arith.constant dense<0xFF800000> : vector<8xf32>
    %57 = vector.multi_reduction <maximumf>, %56, %cst_19 [1] : vector<8x8xf32> to vector<8xf32>
    %58 = vector.shape_cast %57 : vector<8xf32> to vector<8x1xf32>
    %59 = vector.broadcast %58 : vector<8x1xf32> to vector<8x8xf32>
    %60 = arith.subf %56, %59 : vector<8x8xf32>
    %61 = math.exp %60 : vector<8x8xf32>
    %cst_20 = arith.constant dense<0.000000e+00> : vector<8xf32>
    %62 = vector.multi_reduction <add>, %61, %cst_20 [1] : vector<8x8xf32> to vector<8xf32>
    %63 = vector.shape_cast %62 : vector<8xf32> to vector<8x1xf32>
    %64 = arith.truncf %61 : vector<8x8xf32> to vector<8x8xbf16>
    %65 = vector.extract_strided_slice %17 {offsets = [0, 16], sizes = [8, 8], strides = [1, 1]} : vector<8x32xbf16> to vector<8x8xbf16>
    %cst_21 = arith.constant dense<0.000000e+00> : vector<8x8xf32>
    %66 = tpu.matmul %64, %65, %cst_21 {dimension_numbers = #tpu.dot_dimension_numbers<[1], [0], [0], [1], [0, 0, 1, 1], [], []>} : vector<8x8xbf16>, vector<8x8xbf16>, vector<8x8xf32> -> vector<8x8xf32>
    %67 = tpu.reciprocal %63 {approx = true} : vector<8x1xf32> -> vector<8x1xf32>
    %68 = vector.broadcast %67 : vector<8x1xf32> to vector<8x8xf32>
    %69 = arith.mulf %66, %68 : vector<8x8xf32>
    %70 = arith.truncf %69 : vector<8x8xf32> to vector<8x8xbf16>
    %c0_22 = arith.constant 0 : index
    %c16 = arith.constant 16 : index
    %71 = vector.load %arg10[%c0_22, %c16] : memref<8x32xbf16, #tpu.memory_space<vmem>>, vector<8x8xbf16>
    tpu.vector_store %arg10[%c0_22, %c16], %70 {strides = array<i32>} : memref<8x32xbf16, #tpu.memory_space<vmem>>, vector<8x8xbf16>,
    %72 = vector.extract_strided_slice %11 {offsets = [0, 24], sizes = [8, 8], strides = [1, 1]} : vector<8x32xbf16> to vector<8x8xbf16>
    %73 = vector.extract_strided_slice %14 {offsets = [0, 24], sizes = [8, 8], strides = [1, 1]} : vector<8x32xbf16> to vector<8x8xbf16>
    %cst_23 = arith.constant dense<0.000000e+00> : vector<8x8xf32>
    %74 = tpu.matmul %72, %73, %cst_23 {dimension_numbers = #tpu.dot_dimension_numbers<[1], [1], [0], [0], [0, 0, 1, 0], [], []>} : vector<8x8xbf16>, vector<8x8xbf16>, vector<8x8xf32> -> vector<8x8xf32>
    %cst_24 = arith.constant dense<0xFF800000> : vector<8xf32>
    %75 = vector.multi_reduction <maximumf>, %74, %cst_24 [1] : vector<8x8xf32> to vector<8xf32>
    %76 = vector.shape_cast %75 : vector<8xf32> to vector<8x1xf32>
    %77 = vector.broadcast %76 : vector<8x1xf32> to vector<8x8xf32>
    %78 = arith.subf %74, %77 : vector<8x8xf32>
    %79 = math.exp %78 : vector<8x8xf32>
    %cst_25 = arith.constant dense<0.000000e+00> : vector<8xf32>
    %80 = vector.multi_reduction <add>, %79, %cst_25 [1] : vector<8x8xf32> to vector<8xf32>
    %81 = vector.shape_cast %80 : vector<8xf32> to vector<8x1xf32>
    %82 = arith.truncf %79 : vector<8x8xf32> to vector<8x8xbf16>
    %83 = vector.extract_strided_slice %17 {offsets = [0, 24], sizes = [8, 8], strides = [1, 1]} : vector<8x32xbf16> to vector<8x8xbf16>
    %cst_26 = arith.constant dense<0.000000e+00> : vector<8x8xf32>
    %84 = tpu.matmul %82, %83, %cst_26 {dimension_numbers = #tpu.dot_dimension_numbers<[1], [0], [0], [1], [0, 0, 1, 1], [], []>} : vector<8x8xbf16>, vector<8x8xbf16>, vector<8x8xf32> -> vector<8x8xf32>
    %85 = tpu.reciprocal %81 {approx = true} : vector<8x1xf32> -> vector<8x1xf32>
    %86 = vector.broadcast %85 : vector<8x1xf32> to vector<8x8xf32>
    %87 = arith.mulf %84, %86 : vector<8x8xf32>
    %88 = arith.truncf %87 : vector<8x8xf32> to vector<8x8xbf16>
    %c0_27 = arith.constant 0 : index
    %c24 = arith.constant 24 : index
    %89 = vector.load %arg10[%c0_27, %c24] : memref<8x32xbf16, #tpu.memory_space<vmem>>, vector<8x8xbf16>
    tpu.vector_store %arg10[%c0_27, %c24], %88 {strides = array<i32>} : memref<8x32xbf16, #tpu.memory_space<vmem>>, vector<8x8xbf16>,
    %c0_28 = arith.constant 0 : index
    %c0_29 = arith.constant 0 : index
    %90 = vector.load %arg11[%c0_28, %c0_29] : memref<8x32xf32, #tpu.memory_space<vmem>>, vector<8x32xf32>
    %c0_30 = arith.constant 0 : index
    %c0_31 = arith.constant 0 : index
    %91 = vector.load %arg10[%c0_30, %c0_31] : memref<8x32xbf16, #tpu.memory_space<vmem>>, vector<8x32xbf16>
    %c0_32 = arith.constant 0 : index
    %c0_33 = arith.constant 0 : index
    %c0_34 = arith.constant 0 : index
    %92 = vector.load %arg6[%c0_32, %c0_33, %c0_34] : memref<1x32x32xbf16, #tpu.memory_space<vmem>>, vector<1x32x32xbf16>
    %93 = vector.shape_cast %92 : vector<1x32x32xbf16> to vector<32x32xbf16>
    %cst_35 = arith.constant dense<0.000000e+00> : vector<8x32xf32>
    %94 = tpu.matmul %91, %93, %cst_35 {dimension_numbers = #tpu.dot_dimension_numbers<[1], [0], [0], [1], [0, 0, 1, 1], [], []>} : vector<8x32xbf16>, vector<32x32xbf16>, vector<8x32xf32> -> vector<8x32xf32>
    %95 = arith.addf %90, %94 : vector<8x32xf32>
    %c0_36 = arith.constant 0 : index
    %c0_37 = arith.constant 0 : index
    %96 = vector.load %arg11[%c0_36, %c0_37] : memref<8x32xf32, #tpu.memory_space<vmem>>, vector<8x32xf32>
    tpu.vector_store %arg11[%c0_36, %c0_37], %95 {strides = array<i32>} : memref<8x32xf32, #tpu.memory_space<vmem>>, vector<8x32xf32>,
    %c0_i32_38 = arith.constant 0 : i32
    %97 = arith.cmpi eq, %arg2, %c0_i32_38 : i32
    %98 = arith.extui %97 : i1 to i32
    %c0_i32_39 = arith.constant 0 : i32
    %99 = arith.cmpi ne, %98, %c0_i32_39 : i32
    scf.if %99 {
      %c0_40 = arith.constant 0 : index
      %c0_41 = arith.constant 0 : index
      %100 = vector.load %arg11[%c0_40, %c0_41] : memref<8x32xf32, #tpu.memory_space<vmem>>, vector<8x32xf32>
      %c0_42 = arith.constant 0 : index
      %c0_43 = arith.constant 0 : index
      %101 = vector.load %arg7[%c0_42, %c0_43] : memref<1x32xf32, #tpu.memory_space<vmem>>, vector<1x32xf32>
      %102 = vector.broadcast %101 : vector<1x32xf32> to vector<8x32xf32>
      %103 = arith.addf %100, %102 : vector<8x32xf32>
      %c0_44 = arith.constant 0 : index
      %c0_45 = arith.constant 0 : index
      %c0_46 = arith.constant 0 : index
      %104 = vector.load %arg8[%c0_44, %c0_45, %c0_46] : memref<1x8x32xf32, #tpu.memory_space<vmem>>, vector<1x8x32xf32>
      %105 = vector.shape_cast %104 : vector<1x8x32xf32> to vector<8x32xf32>
      %106 = vector.shape_cast %103 : vector<8x32xf32> to vector<1x8x32xf32>
      tpu.vector_store %arg8[%c0_44, %c0_45, %c0_46], %106 {strides = array<i32>} : memref<1x8x32xf32, #tpu.memory_space<vmem>>, vector<1x8x32xf32>,
    } else {
    }
    return
  }
  func.func @transform_0(%arg0: i32, %arg1: i32, %arg2: i32) -> (i32, i32, i32) {
    %c0_i32 = arith.constant 0 : i32
    %c0_i32_0 = arith.constant 0 : i32
    %c0_i32_1 = arith.constant 0 : i32
    return %arg0, %c0_i32, %c0_i32_0 : i32, i32, i32
  }
  func.func @transform_1(%arg0: i32, %arg1: i32, %arg2: i32) -> (i32, i32, i32) {
    %c0_i32 = arith.constant 0 : i32
    %c0_i32_0 = arith.constant 0 : i32
    %c0_i32_1 = arith.constant 0 : i32
    return %arg2, %c0_i32, %c0_i32_0 : i32, i32, i32
  }
  func.func @transform_2(%arg0: i32, %arg1: i32, %arg2: i32) -> (i32, i32, i32) {
    %c0_i32 = arith.constant 0 : i32
    %c0_i32_0 = arith.constant 0 : i32
    %c0_i32_1 = arith.constant 0 : i32
    return %arg2, %c0_i32, %c0_i32_0 : i32, i32, i32
  }
  func.func @transform_3(%arg0: i32, %arg1: i32, %arg2: i32) -> (i32, i32, i32) {
    %c0_i32 = arith.constant 0 : i32
    %c0_i32_0 = arith.constant 0 : i32
    %c0_i32_1 = arith.constant 0 : i32
    return %arg2, %c0_i32, %c0_i32_0 : i32, i32, i32
  }
  func.func @transform_4(%arg0: i32, %arg1: i32, %arg2: i32) -> (i32, i32) {
    %c0_i32 = arith.constant 0 : i32
    %c0_i32_0 = arith.constant 0 : i32
    %c0_i32_1 = arith.constant 0 : i32
    return %c0_i32, %c0_i32_0 : i32, i32
  }
  func.func @transform_5(%arg0: i32, %arg1: i32, %arg2: i32) -> (i32, i32, i32) {
    %c0_i32 = arith.constant 0 : i32
    %c0_i32_0 = arith.constant 0 : i32
    return %arg0, %arg1, %c0_i32 : i32, i32, i32
  }
}

</mosaic_0001>

<llo_original>
// kernel: tpu_custom_call.1
$region0: #{tpu_custom_call.1}
  #allocation0 [shape = 'u32[]', space=smem, size = 0x4, offset = 0x4, fixed_abs, tag = 'smem constant byte address 0x4 - core index']
  #allocation1 [shape = 'u32[72,128]{1,0:T(1,128)}', space=vmem, size = 0x9000, scoped, tag = 'internal scratch']
  #allocation2 [shape = 'bf16[1,3,8,32]{3,2,1,0:T(8,128)(2,1)}', space=vmem, size = 0x1800, scoped, tag = 'scratch operand']
  #allocation3 [shape = 'bf16[8,32]{1,0:T(8,128)(2,1)}', space=vmem, size = 0x800, scoped, tag = 'scratch operand']
  #allocation4 [shape = 'f32[8,32]{1,0:T(8,128)}', space=vmem, size = 0x1000, scoped, tag = 'scratch operand']
  %s0 = inlined_call_operand.hbm [shape: bf16[2,8,32], index: 0, kind: input, shape index: {}]
  %s1 = inlined_call_operand.hbm [shape: bf16[1,32,96], index: 1, kind: input, shape index: {}]
  %s2 = inlined_call_operand.vmem [shape: f32[1,1,96], index: 2, kind: input, shape index: {}]
  %s3 = inlined_call_operand.hbm [shape: bf16[1,32,32], index: 3, kind: input, shape index: {}]
  %s4 = inlined_call_operand.vmem [shape: f32[1,32], index: 4, kind: input, shape index: {}]
  %s5 = inlined_call_operand.hbm [shape: f32[2,8,32], index: 5, kind: output, shape index: {}]
  %s6 = sld [smem:[#allocation0]]
  $region77: #{tpu_custom_call.1} parent=0
    _
  %s8 = ssub.s32 1, %s6
  %s9 = scalar_select 0, %s8, %s6
  $region1: #{tpu_custom_call.1} parent=0
    #allocation5 [shape = 'u8[4096]{0}', space=vmem, size = 0x1000, scoped, tag = 'input window, operand 0']
    #allocation6 [shape = 's32[2]{0}', space=sflag, size = 0x8, scoped, tag = 'scoped memory for tpu_custom_call.1']
    #allocation7 [shape = 's32[2]{0}', space=sflag, size = 0x8, scoped, tag = 'scoped memory for tpu_custom_call.1']
    #allocation8 [shape = 'u8[8192]{0}', space=vmem, size = 0x2000, scoped, tag = 'input window, operand 1, single buffered']
    #allocation9 [shape = 's32[1]{0}', space=sflag, size = 0x4, scoped, tag = 'scoped memory for tpu_custom_call.1']
    #allocation10 [shape = 'u8[8192]{0}', space=vmem, size = 0x2000, scoped, tag = 'input window, operand 3, single buffered']
    #allocation11 [shape = 'u8[8192]{0}', space=vmem, size = 0x2000, scoped, tag = 'output window, operand 0']
    %10 = vsyncpa [#allocation6], 0
    %s11 = scalar_lea.sflag [#allocation6], 1
    %12 = vsyncpa %s11, 0
    %13 = vsyncpa [#allocation9], 0
    %14 = vsyncpa [#allocation7], 0
    %s15 = scalar_lea.sflag [#allocation7], 1
    %16 = vsyncpa %s15, 0
    loop: start=0, step=1, limit=4
    $region2: #{tpu_custom_call.1} parent=1 // loop_pre_header
      _
    $region3: #{tpu_custom_call.1} parent=1 // loop_header
      %s18 = sphi 0, %s22
      %p19 = scmp.ge.s32.totalorder %s18, 4
      %s25 = sphi 0, %s44
      %s26 = sphi 0, %s40
      %s27 = sphi 0, %s36
      %s28 = sphi 0, %s25
      %s29 = sphi 0, %s26
      %s30 = sphi 0, %s27
      %s31 = sphi 0, %s28
      %s32 = sphi 0, %s29
      %s33 = sphi 0, %s30
      %s47 = sphi 0, %s49
      %s50 = sphi 0, %s47
      %s51 = sphi 0, %s50
      %s67 = sphi 0, %s51
      %s73 = sphi 0, %s75
      %s76 = sphi 0, %s73
      %s77 = sphi 0, %s76
      %s93 = sphi 0, %s77
      %s99 = sphi 0, %s101
      %s102 = sphi 0, %s99
      %s103 = sphi 0, %s102
      %s119 = sphi 0, %s103
      %s125 = sphi 0, %s127
      %s128 = sphi 0, %s125
      %s129 = sphi 0, %s128
      %s145 = sphi 0, %s129
      %s149 = sphi 0, %s149
      %s151 = sphi 0, %s149
      %s152 = sphi 0, %s151
      %s166 = sphi 0, %s152
      %s174 = sphi 0, %s176
      %s177 = sphi 0, %s174
      %s178 = sphi 0, %s177
      %s194 = sphi 0, %s178
    $region4: #{tpu_custom_call.1} parent=1 // loop_header_branch
      %21 = sbr.rel (%p19) target = $region8
    $region5: #{tpu_custom_call.1} parent=1 // loop_body
      %s23 = ssub.s32 %s18, 1
      %s24 = ssub.s32 %s18, 2
      %s34 = sadd.s32 1, %s27
      %p35 = scmp.ge.s32.totalorder %s34, 1
      %s36 = scalar_select %p35, 0, %s34
      %s37 = sadd.s32 1, %s26
      %s38 = scalar_select %p35, %s37, %s26
      %p39 = scmp.ge.s32.totalorder %s38, 1
      %s40 = scalar_select %p39, 0, %s38
      %s41 = sadd.s32 1, %s25
      %s42 = scalar_select %p39, %s41, %s25
      %p43 = scmp.ge.s32.totalorder %s42, 2
      %s44 = scalar_select %p43, 0, %s42
      %s45 = ssub.s32 %s25, %s44
      %p46 = scmp.eq.s32.totalorder %s45, 0
      %s48 = sadd.s32 %s47, 1
      %s49 = scalar_select %p46, %s47, %s48
      %p52 = pneg %p46
      %p53 = scmp.eq.s32.totalorder %s18, 1
      %p54 = por %p52, %p53
      %p55 = scmp.ne.s32.totalorder %s47, %s50
      %p56 = scmp.eq.s32.totalorder %s18, 0
      %p57 = por %p55, %p56
      %p58 = scmp.ne.s32.totalorder %s47, %s50
      %p59 = scmp.eq.s32.totalorder %s23, 1
      %p60 = por %p58, %p59
      %p61 = scmp.ne.s32.totalorder %s50, %s51
      %p62 = scmp.eq.s32.totalorder %s23, 0
      %p63 = por %p61, %p62
      %p64 = scmp.ne.s32.totalorder %s50, %s51
      %p65 = scmp.eq.s32.totalorder %s24, 1
      %p66 = por %p64, %p65
      %p68 = scmp.ne.s32.totalorder %s51, %s67
      %p69 = scmp.eq.s32.totalorder %s24, 0
      %p70 = por %p68, %p69
      %s71 = ssub.s32 %s27, %s36
      %p72 = scmp.eq.s32.totalorder %s71, 0
      %s74 = sadd.s32 %s73, 1
      %s75 = scalar_select %p72, %s73, %s74
      %p78 = pneg %p72
      %p79 = scmp.eq.s32.totalorder %s18, 1
      %p80 = por %p78, %p79
      %p81 = scmp.ne.s32.totalorder %s73, %s76
      %p82 = scmp.eq.s32.totalorder %s18, 0
      %p83 = por %p81, %p82
      %p84 = scmp.ne.s32.totalorder %s73, %s76
      %p85 = scmp.eq.s32.totalorder %s23, 1
      %p86 = por %p84, %p85
      %p87 = scmp.ne.s32.totalorder %s76, %s77
      %p88 = scmp.eq.s32.totalorder %s23, 0
      %p89 = por %p87, %p88
      %p90 = scmp.ne.s32.totalorder %s76, %s77
      %p91 = scmp.eq.s32.totalorder %s24, 1
      %p92 = por %p90, %p91
      %p94 = scmp.ne.s32.totalorder %s77, %s93
      %p95 = scmp.eq.s32.totalorder %s24, 0
      %p96 = por %p94, %p95
      %s97 = ssub.s32 %s27, %s36
      %p98 = scmp.eq.s32.totalorder %s97, 0
      %s100 = sadd.s32 %s99, 1
      %s101 = scalar_select %p98, %s99, %s100
      %p104 = pneg %p98
      %p105 = scmp.eq.s32.totalorder %s18, 1
      %p106 = por %p104, %p105
      %p107 = scmp.ne.s32.totalorder %s99, %s102
      %p108 = scmp.eq.s32.totalorder %s18, 0
      %p109 = por %p107, %p108
      %p110 = scmp.ne.s32.totalorder %s99, %s102
      %p111 = scmp.eq.s32.totalorder %s23, 1
      %p112 = por %p110, %p111
      %p113 = scmp.ne.s32.totalorder %s102, %s103
      %p114 = scmp.eq.s32.totalorder %s23, 0
      %p115 = por %p113, %p114
      %p116 = scmp.ne.s32.totalorder %s102, %s103
      %p117 = scmp.eq.s32.totalorder %s24, 1
      %p118 = por %p116, %p117
      %p120 = scmp.ne.s32.totalorder %s103, %s119
      %p121 = scmp.eq.s32.totalorder %s24, 0
      %p122 = por %p120, %p121
      %s123 = ssub.s32 %s27, %s36
      %p124 = scmp.eq.s32.totalorder %s123, 0
      %s126 = sadd.s32 %s125, 1
      %s127 = scalar_select %p124, %s125, %s126
      %p130 = pneg %p124
      %p131 = scmp.eq.s32.totalorder %s18, 1
      %p132 = por %p130, %p131
      %p133 = scmp.ne.s32.totalorder %s125, %s128
      %p134 = scmp.eq.s32.totalorder %s18, 0
      %p135 = por %p133, %p134
      %p136 = scmp.ne.s32.totalorder %s125, %s128
      %p137 = scmp.eq.s32.totalorder %s23, 1
      %p138 = por %p136, %p137
      %p139 = scmp.ne.s32.totalorder %s128, %s129
      %p140 = scmp.eq.s32.totalorder %s23, 0
      %p141 = por %p139, %p140
      %p142 = scmp.ne.s32.totalorder %s128, %s129
      %p143 = scmp.eq.s32.totalorder %s24, 1
      %p144 = por %p142, %p143
      %p146 = scmp.ne.s32.totalorder %s129, %s145
      %p147 = scmp.eq.s32.totalorder %s24, 0
      %p148 = por %p146, %p147
      %s150 = sadd.s32 %s149, 1
      %p153 = scmp.eq.s32.totalorder %s18, 1
      %p154 = scmp.ne.s32.totalorder %s149, %s151
      %p155 = scmp.eq.s32.totalorder %s18, 0
      %p156 = por %p154, %p155
      %p157 = scmp.ne.s32.totalorder %s149, %s151
      %p158 = scmp.eq.s32.totalorder %s23, 1
      %p159 = por %p157, %p158
      %p160 = scmp.ne.s32.totalorder %s151, %s152
      %p161 = scmp.eq.s32.totalorder %s23, 0
      %p162 = por %p160, %p161
      %p163 = scmp.ne.s32.totalorder %s151, %s152
      %p164 = scmp.eq.s32.totalorder %s24, 1
      %p165 = por %p163, %p164
      %p167 = scmp.ne.s32.totalorder %s152, %s166
      %p168 = scmp.eq.s32.totalorder %s24, 0
      %p169 = por %p167, %p168
      %s170 = ssub.s32 %s25, %s44
      %s171 = ssub.s32 %s26, %s40
      %s172 = sor.u32 %s170, %s171
      %p173 = scmp.eq.s32.totalorder %s172, 0
      %s175 = sadd.s32 %s174, 1
      %s176 = scalar_select %p173, %s174, %s175
      %p179 = pneg %p173
      %p180 = scmp.eq.s32.totalorder %s18, 1
      %p181 = por %p179, %p180
      %p182 = scmp.ne.s32.totalorder %s174, %s177
      %p183 = scmp.eq.s32.totalorder %s18, 0
      %p184 = por %p182, %p183
      %p185 = scmp.ne.s32.totalorder %s174, %s177
      %p186 = scmp.eq.s32.totalorder %s23, 1
      %p187 = por %p185, %p186
      %p188 = scmp.ne.s32.totalorder %s177, %s178
      %p189 = scmp.eq.s32.totalorder %s23, 0
      %p190 = por %p188, %p189
      %p191 = scmp.ne.s32.totalorder %s177, %s178
      %p192 = scmp.eq.s32.totalorder %s24, 1
      %p193 = por %p191, %p192
      %p195 = scmp.ne.s32.totalorder %s178, %s194
      %p196 = scmp.eq.s32.totalorder %s24, 0
      %p197 = por %p195, %p196
      %p198 = scmp.le.s32.totalorder 1, %s18
      %p199 = scmp.lt.s32.totalorder %s18, 3
      %p200 = pnand %p198, %p199
      %p201 = pneg %p200
      // Predicated region
      $region9: #{tpu_custom_call.1} parent=5 // pred_check
        _
      $region10: #{tpu_custom_call.1} parent=5 // pred_check_branch
        %203 = sbr.rel (%p200) target = $region12
      $region11: #{tpu_custom_call.1} parent=5 // pred_region
        %s204 = ssub.s32 %s18, 1
        // Predicated region
        $region13: #{tpu_custom_call.1} parent=11 // pred_check
          %p205 = pneg %p89
        $region14: #{tpu_custom_call.1} parent=11 // pred_check_branch
          %207 = sbr.rel (%p205) target = $region16
        $region15: #{tpu_custom_call.1} parent=11 // pred_region
          %209 = vsyncadd [#allocation9], 0
          %s210 = smul.addr %s30, 4
          %s211 = smul.addr %s210, 4
          %s212 = scalar_lea.hbm %s1, %s211
          %s213 = sshll.u32 %s212, 4
          %s214 = int_to_ptr.hbm [resolvable:$true] %s213
          %s215 = sshll.u32 [#allocation8], 4
          %s216 = int_to_ptr.vmem [resolvable:$true] %s215
          %221 = dma.hbm_to_vmem [thread:$0]  %s214, 256, %s216, [#allocation9], 64, 64, 4
        $region16: #{tpu_custom_call.1} parent=11 // pred_fallthru
          _
        // Predicated region
        $region17: #{tpu_custom_call.1} parent=11 // pred_check
          %p222 = pneg %p115
        $region18: #{tpu_custom_call.1} parent=11 // pred_check_branch
          %224 = sbr.rel (%p222) target = $region20
        $region19: #{tpu_custom_call.1} parent=11 // pred_region
          %p225 = scmp.lt.s32.totalorder %s30, 0
          %s226 = scalar_select %p225, %s30, 0
          %s227 = scalar_lea.vmem %s2, %s226
        $region20: #{tpu_custom_call.1} parent=11 // pred_fallthru
          _
        // Predicated region
        $region21: #{tpu_custom_call.1} parent=11 // pred_check
          %p228 = pneg %p141
        $region22: #{tpu_custom_call.1} parent=11 // pred_check_branch
          %230 = sbr.rel (%p228) target = $region24
        $region23: #{tpu_custom_call.1} parent=11 // pred_region
          %232 = vsyncadd [#allocation9], 0
          %s233 = smul.addr %s30, 4
          %s234 = smul.addr %s233, 4
          %s235 = scalar_lea.hbm %s3, %s234
          %s236 = sshll.u32 %s235, 4
          %s237 = int_to_ptr.hbm [resolvable:$true] %s236
          %s238 = sshll.u32 [#allocation10], 4
          %s239 = int_to_ptr.vmem [resolvable:$true] %s238
          %244 = dma.hbm_to_vmem [thread:$0]  %s237, 256, %s239, [#allocation9], 64, 64, 4
        $region24: #{tpu_custom_call.1} parent=11 // pred_fallthru
          _
        // Predicated region
        $region25: #{tpu_custom_call.1} parent=11 // pred_check
          %p245 = pneg %p162
        $region26: #{tpu_custom_call.1} parent=11 // pred_check_branch
          %247 = sbr.rel (%p245) target = $region28
        $region27: #{tpu_custom_call.1} parent=11 // pred_region
          _
        $region28: #{tpu_custom_call.1} parent=11 // pred_fallthru
          _
      $region12: #{tpu_custom_call.1} parent=5 // pred_fallthru
        _
      %p248 = scmp.lt.s32.totalorder %s18, 2
      // Predicated region
      $region29: #{tpu_custom_call.1} parent=5 // pred_check
        %p249 = pneg %p248
      $region30: #{tpu_custom_call.1} parent=5 // pred_check_branch
        %251 = sbr.rel (%p249) target = $region32
      $region31: #{tpu_custom_call.1} parent=5 // pred_region
        // Predicated region
        $region33: #{tpu_custom_call.1} parent=31 // pred_check
          %p252 = pneg %p57
        $region34: #{tpu_custom_call.1} parent=31 // pred_check_branch
          %254 = sbr.rel (%p252) target = $region36
        $region35: #{tpu_custom_call.1} parent=31 // pred_region
          %s255 = sand.u32 %s47, 1
          %s256 = scalar_lea.sflag [#allocation6], %s255
          %s257 = sand.u32 %s47, 1
          %s258 = smul.addr %s257, 4
          %s259 = scalar_lea.vmem [#allocation5], %s258
          %261 = vsyncadd %s256, 0
          %s262 = smul.addr %s25, 4
          %s263 = scalar_lea.hbm %s0, %s262
          %s265 = sshll.u32 %s263, 4
          %s266 = int_to_ptr.hbm [resolvable:$true] %s265
          %s267 = sshll.u32 %s259, 4
          %s268 = int_to_ptr.vmem [resolvable:$true] %s267
          %270 = dma.hbm_to_vmem [thread:$0]  %s266, 64, %s268, %s256
        $region36: #{tpu_custom_call.1} parent=31 // pred_fallthru
          _
      $region32: #{tpu_custom_call.1} parent=5 // pred_fallthru
        _
      %p271 = scmp.le.s32.totalorder 1, %s18
      %p272 = scmp.lt.s32.totalorder %s18, 3
      %p273 = pnand %p271, %p272
      %p274 = pneg %p273
      // Predicated region
      $region37: #{tpu_custom_call.1} parent=5 // pred_check
        _
      $region38: #{tpu_custom_call.1} parent=5 // pred_check_branch
        %276 = sbr.rel (%p273) target = $region40
      $region39: #{tpu_custom_call.1} parent=5 // pred_region
        %s277 = ssub.s32 %s18, 1
        %s278 = sand.u32 %s50, 1
        %s279 = scalar_lea.sflag [#allocation6], %s278
        %s280 = sand.u32 %s50, 1
        %s281 = smul.addr %s280, 4
        %s282 = scalar_lea.vmem [#allocation5], %s281
        // Predicated region
        $region41: #{tpu_custom_call.1} parent=39 // pred_check
          %p283 = pneg %p63
        $region42: #{tpu_custom_call.1} parent=39 // pred_check_branch
          %285 = sbr.rel (%p283) target = $region44
        $region43: #{tpu_custom_call.1} parent=39 // pred_region
          %287 = dma.done %s279, 64
        $region44: #{tpu_custom_call.1} parent=39 // pred_fallthru
          _
        // Predicated region
        $region45: #{tpu_custom_call.1} parent=39 // pred_check
          %p288 = pneg %p89
        $region46: #{tpu_custom_call.1} parent=39 // pred_check_branch
          %290 = sbr.rel (%p288) target = $region48
        $region47: #{tpu_custom_call.1} parent=39 // pred_region
          %292 = dma.done [#allocation9], 256
        $region48: #{tpu_custom_call.1} parent=39 // pred_fallthru
          _
        // Predicated region
        $region49: #{tpu_custom_call.1} parent=39 // pred_check
          %p293 = pneg %p141
        $region50: #{tpu_custom_call.1} parent=39 // pred_check_branch
          %295 = sbr.rel (%p293) target = $region52
        $region51: #{tpu_custom_call.1} parent=39 // pred_region
          %297 = dma.done [#allocation9], 256
        $region52: #{tpu_custom_call.1} parent=39 // pred_fallthru
          _
        %s298 = sand.u32 %s50, 1
        %s299 = scalar_lea.sflag [#allocation6], %s298
        %s300 = sand.u32 %s50, 1
        %s301 = smul.addr %s300, 4
        %s302 = scalar_lea.vmem [#allocation5], %s301
        %p303 = pneg %p63
        %p304 = pneg %p60
        %p305 = pneg %p89
        %p306 = pneg %p86
        %p307 = scmp.lt.s32.totalorder %s30, 0
        %s308 = scalar_select %p307, %s30, 0
        %s309 = scalar_lea.vmem %s2, %s308
        %p310 = pneg %p115
        %p311 = pneg %p112
        %p312 = pneg %p141
        %p313 = pneg %p138
        %p314 = pneg %p162
        %p315 = pneg %p159
        %p316 = pneg %p190
        %p317 = pneg %p187
        %s318 = sand.u32 %s177, 1
        %s319 = scalar_lea.sflag [#allocation7], %s318
        %s320 = sand.u32 %s177, 1
        %s321 = smul.addr %s320, 8
        %s322 = scalar_lea.vmem [#allocation11], %s321
        %p323 = scmp.lt.s32.totalorder %s30, 0
        %s324 = scalar_select %p323, %s30, 0
        %s325 = scalar_lea.vmem %s2, %s324
        %p327 = scmp.eq.s32.totalorder %s29, 0
        // Predicated region
        $region53: #{tpu_custom_call.1} parent=39 // pred_check
          %p328 = pneg %p327
        $region54: #{tpu_custom_call.1} parent=39 // pred_check_branch
          %330 = sbr.rel (%p328) target = $region56
        $region55: #{tpu_custom_call.1} parent=39 // pred_region
          %v331 = vld [vmem:[%s282] sm:$0xf]
          %v332 = vld [vmem:[#allocation8] sm:$0xf]
          %v333 = vld [vmem:[#allocation8 + $0x4] sm:$0xf]
          %v334 = vld [vmem:[#allocation8 + $0x8] sm:$0xf]
          %v335 = vld [vmem:[#allocation8 + $0xc] sm:$0xf]
          %v336 = vld [vmem:[%s325] sm:$0x1]
          %v338 = vperm.slane %v336, 0
          %v344 = vunpack.c.l.b16 %v332
          %v345 = vunpack.c.l.b16 %v333
          %v346 = vunpack.c.l.b16 %v334
          %v347 = vunpack.c.l.b16 %v335
          %v348 = vpack.c.b16 %v345, %v344
          %v349 = vpack.c.b16 %v347, %v346
          %vm352 = vcmask 261120
          %v354 = vsel %vm352, %v331, 0
          %356 = vmatpush.bf16.msra.mxu0 0
          %357 = vmatpush.bf16.msra.mxu0 0
          %358 = vmatpush.bf16.msra.mxu0 0
          %359 = vmatpush.bf16.msra.mxu0 0
          %360 = vmatpush.bf16.msra.mxu0 0
          %361 = vmatpush.bf16.msra.mxu0 0
          %362 = vmatpush.bf16.msra.mxu0 %v349
          %363 = vmatpush.bf16.msra.mxu0 %v348
          %364 = vmatmul.bf16.gmra.mxu0 %v354
          %v365 = vpop.f32.mrf.mxu0
          %v366 = vadd.f32 %v338, %v365
          %v367 = vpop.f32.mrf.mxu0
          %368 = vdwg.mxu0
          %v369 = vpack.c.bf16 %v366, %v366
          %s370 = smul.u32 %s30, 3
          %s371 = smul.addr %s370, 4
          %s372 = scalar_lea.vmem [#allocation2], %s371
          %vm373 = vcmask 257024
          %374 = vst.msk [vmem:[%s372] sm:$0xf] %vm373, %v369
          %376 = vrot.lane.b32.xlu0 %v369, 96
          %v377 = vpop.permute.xlu0 %376
          %s379 = sadd.s32 1, %s370
          %s380 = smul.addr %s379, 4
          %s381 = scalar_lea.vmem [#allocation2], %s380
          %382 = vst.msk [vmem:[%s381] sm:$0xf] %vm373, %v377
          %383 = vrot.lane.b32.xlu0 %v369, 64
          %v384 = vpop.permute.xlu0 %383
          %s386 = sadd.s32 2, %s370
          %s387 = smul.addr %s386, 4
          %s388 = scalar_lea.vmem [#allocation2], %s387
          %389 = vst.msk [vmem:[%s388] sm:$0xf] %vm373, %v384
        $region56: #{tpu_custom_call.1} parent=39 // pred_fallthru
          _
        %p390 = scmp.eq.s32.totalorder %s30, 0
        // Predicated region
        $region57: #{tpu_custom_call.1} parent=39 // pred_check
          %p391 = pneg %p390
        $region58: #{tpu_custom_call.1} parent=39 // pred_check_branch
          %393 = sbr.rel (%p391) target = $region60
        $region59: #{tpu_custom_call.1} parent=39 // pred_region
          %vm394 = vcmask 261120
          %395 = vst.msk [vmem:[#allocation4] sm:$0xff] %vm394, 0.0
        $region60: #{tpu_custom_call.1} parent=39 // pred_fallthru
          _
        %s396 = smul.u32 %s29, 8
        %s397 = sshra.s32 %s396, 3
        %s398 = sand.u32 %s396, 7
        %s399 = smul.u32 %s30, 3
        %s400 = sadd.s32 %s397, %s399
        %s401 = smul.addr %s400, 4
        %s402 = scalar_lea.vmem [#allocation2], %s401
        %v403 = vld [vmem:[%s402] sm:$0xf]
        %s404 = sadd.s32 1, %s399
        %s405 = smul.addr %s404, 4
        %s406 = scalar_lea.vmem [#allocation2], %s405
        %v407 = vld [vmem:[%s406] sm:$0xf]
        %s408 = sadd.s32 2, %s399
        %s409 = smul.addr %s408, 4
        %s410 = scalar_lea.vmem [#allocation2], %s409
        %v411 = vld [vmem:[%s410] sm:$0xf]
        %vm412 = vcmask 64512
        %v414 = vsel %vm412, %v403, 0
        %v417 = vsel %vm412, %v407, 0
        %419 = vmatpush.bf16.xpose.msra.mxu0 0
        %420 = vmatpush.bf16.xpose.msra.mxu0 0
        %421 = vmatpush.bf16.xpose.msra.mxu0 0
        %422 = vmatpush.bf16.xpose.msra.mxu0 0
        %423 = vmatpush.bf16.xpose.msra.mxu0 0
        %424 = vmatpush.bf16.xpose.msra.mxu0 0
        %425 = vmatpush.bf16.xpose.msra.mxu0 0
        %426 = vmatpush.bf16.xpose.msra.mxu0 %v417
        %427 = vmatmul.bf16.gmra.mxu0 %v414
        %v428 = vpop.f32.mrf.mxu0
        %v429 = vadd.f32 0.0, %v428
        %v430 = vpop.f32.mrf.mxu0
        %431 = vdwg.mxu0
        %v432 = vsel %vm412, %v429, -inf
        %433 = vmax.xlane.f32.xlu0 %v432
        %v434 = vpop.xlane.xlu0 %433
        %v435 = vsub.f32 %v429, %v434
        %v436 = vmul.f32 %v435, 1.442695
        %v437 = vpow.pop %v436
        %v438 = vsel %vm412, %v437, 0.0
        %439 = vadd.xlane.f32.xlu0 %v438
        %v440 = vpop.xlane.xlu0 %439
        %v441 = vpack.c.bf16 %v437, %v437
        %v443 = vsel %vm412, %v441, 0
        %vm445 = vcmask 1043456
        %v447 = vsel %vm445, %v411, 0
        %449 = vmatpush.bf16.msra.mxu0 0
        %450 = vmatpush.bf16.msra.mxu0 0
        %451 = vmatpush.bf16.msra.mxu0 0
        %452 = vmatpush.bf16.msra.mxu0 0
        %453 = vmatpush.bf16.msra.mxu0 0
        %454 = vmatpush.bf16.msra.mxu0 0
        %455 = vmatpush.bf16.msra.mxu0 0
        %456 = vmatpush.bf16.msra.mxu0 %v447
        %457 = vmatmul.bf16.gmra.mxu0 %v443
        %v458 = vpop.f32.mrf.mxu0
        %v459 = vadd.f32 0.0, %v458
        %v460 = vpop.f32.mrf.mxu0
        %461 = vdwg.mxu0
        %v462 = vrcp.pop %v440
        %v463 = vmul.f32 %v459, %v462
        %v464 = vpack.c.bf16 %v463, %v463
        %vm465 = vcmask 60416
        %466 = vst.msk [vmem:[#allocation3] sm:$0xf] %vm465, %v464
        %v468 = vunpack.c.l.b16 %v403
        %v469 = vpack.c.b16 %v468, %v468
        %470 = vrot.lane.b32.xlu0 %v469, 120
        %v471 = vpop.permute.xlu0 %470
        %v473 = vunpack.c.l.b16 %v407
        %v474 = vpack.c.b16 %v473, %v473
        %475 = vrot.lane.b32.xlu0 %v474, 120
        %v476 = vpop.permute.xlu0 %475
        %v478 = vsel %vm412, %v471, 0
        %v481 = vsel %vm412, %v476, 0
        %483 = vmatpush.bf16.xpose.msra.mxu0 0
        %484 = vmatpush.bf16.xpose.msra.mxu0 0
        %485 = vmatpush.bf16.xpose.msra.mxu0 0
        %486 = vmatpush.bf16.xpose.msra.mxu0 0
        %487 = vmatpush.bf16.xpose.msra.mxu0 0
        %488 = vmatpush.bf16.xpose.msra.mxu0 0
        %489 = vmatpush.bf16.xpose.msra.mxu0 0
        %490 = vmatpush.bf16.xpose.msra.mxu0 %v481
        %491 = vmatmul.bf16.gmra.mxu0 %v478
        %v492 = vpop.f32.mrf.mxu0
        %v493 = vadd.f32 0.0, %v492
        %v494 = vpop.f32.mrf.mxu0
        %495 = vdwg.mxu0
        %v496 = vsel %vm412, %v493, -inf
        %497 = vmax.xlane.f32.xlu0 %v496
        %v498 = vpop.xlane.xlu0 %497
        %v499 = vsub.f32 %v493, %v498
        %v500 = vmul.f32 %v499, 1.442695
        %v501 = vpow.pop %v500
        %v502 = vsel %vm412, %v501, 0.0
        %503 = vadd.xlane.f32.xlu0 %v502
        %v504 = vpop.xlane.xlu0 %503
        %v505 = vpack.c.bf16 %v501, %v501
        %v507 = vunpack.c.l.b16 %v411
        %v508 = vpack.c.b16 %v507, %v507
        %509 = vrot.lane.b32.xlu0 %v508, 120
        %v510 = vpop.permute.xlu0 %509
        %v512 = vsel %vm412, %v505, 0
        %v515 = vsel %vm445, %v510, 0
        %517 = vmatpush.bf16.msra.mxu0 0
        %518 = vmatpush.bf16.msra.mxu0 0
        %519 = vmatpush.bf16.msra.mxu0 0
        %520 = vmatpush.bf16.msra.mxu0 0
        %521 = vmatpush.bf16.msra.mxu0 0
        %522 = vmatpush.bf16.msra.mxu0 0
        %523 = vmatpush.bf16.msra.mxu0 0
        %524 = vmatpush.bf16.msra.mxu0 %v515
        %525 = vmatmul.bf16.gmra.mxu0 %v512
        %v526 = vpop.f32.mrf.mxu0
        %v527 = vadd.f32 0.0, %v526
        %v528 = vpop.f32.mrf.mxu0
        %529 = vdwg.mxu0
        %v530 = vrcp.pop %v504
        %v531 = vmul.f32 %v527, %v530
        %v532 = vpack.c.bf16 %v531, %v531
        %534 = vrot.lane.b32.xlu0 %v532, 8
        %v535 = vpop.permute.xlu0 %534
        %vm537 = vcmask 126016
        %538 = vst.msk [vmem:[#allocation3] sm:$0xf] %vm537, %v535
        %539 = vrot.lane.b32.xlu0 %v469, 112
        %v540 = vpop.permute.xlu0 %539
        %541 = vrot.lane.b32.xlu0 %v474, 112
        %v542 = vpop.permute.xlu0 %541
        %v544 = vsel %vm412, %v540, 0
        %v547 = vsel %vm412, %v542, 0
        %549 = vmatpush.bf16.xpose.msra.mxu0 0
        %550 = vmatpush.bf16.xpose.msra.mxu0 0
        %551 = vmatpush.bf16.xpose.msra.mxu0 0
        %552 = vmatpush.bf16.xpose.msra.mxu0 0
        %553 = vmatpush.bf16.xpose.msra.mxu0 0
        %554 = vmatpush.bf16.xpose.msra.mxu0 0
        %555 = vmatpush.bf16.xpose.msra.mxu0 0
        %556 = vmatpush.bf16.xpose.msra.mxu0 %v547
        %557 = vmatmul.bf16.gmra.mxu0 %v544
        %v558 = vpop.f32.mrf.mxu0
        %v559 = vadd.f32 0.0, %v558
        %v560 = vpop.f32.mrf.mxu0
        %561 = vdwg.mxu0
        %v562 = vsel %vm412, %v559, -inf
        %563 = vmax.xlane.f32.xlu0 %v562
        %v564 = vpop.xlane.xlu0 %563
        %v565 = vsub.f32 %v559, %v564
        %v566 = vmul.f32 %v565, 1.442695
        %v567 = vpow.pop %v566
        %v568 = vsel %vm412, %v567, 0.0
        %569 = vadd.xlane.f32.xlu0 %v568
        %v570 = vpop.xlane.xlu0 %569
        %v571 = vpack.c.bf16 %v567, %v567
        %572 = vrot.lane.b32.xlu0 %v508, 112
        %v573 = vpop.permute.xlu0 %572
        %v575 = vsel %vm412, %v571, 0
        %v578 = vsel %vm445, %v573, 0
        %580 = vmatpush.bf16.msra.mxu0 0
        %581 = vmatpush.bf16.msra.mxu0 0
        %582 = vmatpush.bf16.msra.mxu0 0
        %583 = vmatpush.bf16.msra.mxu0 0
        %584 = vmatpush.bf16.msra.mxu0 0
        %585 = vmatpush.bf16.msra.mxu0 0
        %586 = vmatpush.bf16.msra.mxu0 0
        %587 = vmatpush.bf16.msra.mxu0 %v578
        %588 = vmatmul.bf16.gmra.mxu0 %v575
        %v589 = vpop.f32.mrf.mxu0
        %v590 = vadd.f32 0.0, %v589
        %v591 = vpop.f32.mrf.mxu0
        %592 = vdwg.mxu0
        %v593 = vrcp.pop %v570
        %v594 = vmul.f32 %v590, %v593
        %v595 = vpack.c.bf16 %v594, %v594
        %597 = vrot.lane.b32.xlu0 %v595, 16
        %v598 = vpop.permute.xlu0 %597
        %vm600 = vcmask 191616
        %601 = vst.msk [vmem:[#allocation3] sm:$0xf] %vm600, %v598
        %602 = vrot.lane.b32.xlu0 %v469, 104
        %v603 = vpop.permute.xlu0 %602
        %604 = vrot.lane.b32.xlu0 %v474, 104
        %v605 = vpop.permute.xlu0 %604
        %v607 = vsel %vm412, %v603, 0
        %v610 = vsel %vm412, %v605, 0
        %612 = vmatpush.bf16.xpose.msra.mxu0 0
        %613 = vmatpush.bf16.xpose.msra.mxu0 0
        %614 = vmatpush.bf16.xpose.msra.mxu0 0
        %615 = vmatpush.bf16.xpose.msra.mxu0 0
        %616 = vmatpush.bf16.xpose.msra.mxu0 0
        %617 = vmatpush.bf16.xpose.msra.mxu0 0
        %618 = vmatpush.bf16.xpose.msra.mxu0 0
        %619 = vmatpush.bf16.xpose.msra.mxu0 %v610
        %620 = vmatmul.bf16.gmra.mxu0 %v607
        %v621 = vpop.f32.mrf.mxu0
        %v622 = vadd.f32 0.0, %v621
        %v623 = vpop.f32.mrf.mxu0
        %624 = vdwg.mxu0
        %v625 = vsel %vm412, %v622, -inf
        %626 = vmax.xlane.f32.xlu0 %v625
        %v627 = vpop.xlane.xlu0 %626
        %v628 = vsub.f32 %v622, %v627
        %v629 = vmul.f32 %v628, 1.442695
        %v630 = vpow.pop %v629
        %v631 = vsel %vm412, %v630, 0.0
        %632 = vadd.xlane.f32.xlu0 %v631
        %v633 = vpop.xlane.xlu0 %632
        %v634 = vpack.c.bf16 %v630, %v630
        %635 = vrot.lane.b32.xlu0 %v508, 104
        %v636 = vpop.permute.xlu0 %635
        %v638 = vsel %vm412, %v634, 0
        %v641 = vsel %vm445, %v636, 0
        %643 = vmatpush.bf16.msra.mxu0 0
        %644 = vmatpush.bf16.msra.mxu0 0
        %645 = vmatpush.bf16.msra.mxu0 0
        %646 = vmatpush.bf16.msra.mxu0 0
        %647 = vmatpush.bf16.msra.mxu0 0
        %648 = vmatpush.bf16.msra.mxu0 0
        %649 = vmatpush.bf16.msra.mxu0 0
        %650 = vmatpush.bf16.msra.mxu0 %v641
        %651 = vmatmul.bf16.gmra.mxu0 %v638
        %v652 = vpop.f32.mrf.mxu0
        %v653 = vadd.f32 0.0, %v652
        %v654 = vpop.f32.mrf.mxu0
        %655 = vdwg.mxu0
        %v656 = vrcp.pop %v633
        %v657 = vmul.f32 %v653, %v656
        %v658 = vpack.c.bf16 %v657, %v657
        %660 = vrot.lane.b32.xlu0 %v658, 24
        %v661 = vpop.permute.xlu0 %660
        %vm663 = vcmask 257216
        %664 = vst.msk [vmem:[#allocation3] sm:$0xf] %vm663, %v661
        %v665 = vld [vmem:[#allocation4] sm:$0xff]
        %v666 = vld [vmem:[#allocation3] sm:$0xf]
        %v667 = vld [vmem:[#allocation10] sm:$0xf]
        %v668 = vld [vmem:[#allocation10 + $0x4] sm:$0xf]
        %v669 = vld [vmem:[#allocation10 + $0x8] sm:$0xf]
        %v670 = vld [vmem:[#allocation10 + $0xc] sm:$0xf]
        %v675 = vunpack.c.l.b16 %v667
        %v676 = vunpack.c.l.b16 %v668
        %v677 = vunpack.c.l.b16 %v669
        %v678 = vunpack.c.l.b16 %v670
        %v679 = vpack.c.b16 %v676, %v675
        %v680 = vpack.c.b16 %v678, %v677
        %vm683 = vcmask 261120
        %v685 = vsel %vm683, %v666, 0
        %687 = vmatpush.bf16.msra.mxu0 0
        %688 = vmatpush.bf16.msra.mxu0 0
        %689 = vmatpush.bf16.msra.mxu0 0
        %690 = vmatpush.bf16.msra.mxu0 0
        %691 = vmatpush.bf16.msra.mxu0 0
        %692 = vmatpush.bf16.msra.mxu0 0
        %693 = vmatpush.bf16.msra.mxu0 %v680
        %694 = vmatpush.bf16.msra.mxu0 %v679
        %695 = vmatmul.bf16.gmra.mxu0 %v685
        %v696 = vpop.f32.mrf.mxu0
        %v697 = vadd.f32 0.0, %v696
        %v698 = vpop.f32.mrf.mxu0
        %699 = vdwg.mxu0
        %v700 = vadd.f32 %v665, %v697
        %701 = vst.msk [vmem:[#allocation4] sm:$0xff] %vm683, %v700
        // Predicated region
        $region61: #{tpu_custom_call.1} parent=39 // pred_check
          %p702 = pneg %p390
        $region62: #{tpu_custom_call.1} parent=39 // pred_check_branch
          %704 = sbr.rel (%p702) target = $region64
        $region63: #{tpu_custom_call.1} parent=39 // pred_region
          %v705 = vld [vmem:[#allocation4] sm:$0xff]
          %v706 = vld [vmem:[%s4] sm:$0x1]
          %v708 = vperm.slane %v706, 0
          %v710 = vadd.f32 %v705, %v708
          %711 = vst.msk [vmem:[%s322] sm:$0xff] %vm683, %v710
        $region64: #{tpu_custom_call.1} parent=39 // pred_fallthru
          _
        %s712 = sand.u32 %s177, 1
        %s713 = scalar_lea.sflag [#allocation7], %s712
        %s714 = sand.u32 %s177, 1
        %s715 = smul.addr %s714, 8
        %s716 = scalar_lea.vmem [#allocation11], %s715
        // Predicated region
        $region65: #{tpu_custom_call.1} parent=39 // pred_check
          %p717 = pneg %p187
        $region66: #{tpu_custom_call.1} parent=39 // pred_check_branch
          %719 = sbr.rel (%p717) target = $region68
        $region67: #{tpu_custom_call.1} parent=39 // pred_region
          %721 = vsyncadd %s713, 0
          %s722 = sadd.s32 %s29, %s28
          %s723 = smul.addr %s722, 8
          %s724 = scalar_lea.hbm %s5, %s723
          %s726 = sshll.u32 %s716, 4
          %s727 = int_to_ptr.vmem [resolvable:$true] %s726
          %s728 = sshll.u32 %s724, 4
          %s729 = int_to_ptr.hbm [resolvable:$true] %s728
          %731 = dma.vmem_to_hbm [thread:$0]  %s727, 128, %s729, %s713
        $region68: #{tpu_custom_call.1} parent=39 // pred_fallthru
          _
      $region40: #{tpu_custom_call.1} parent=5 // pred_fallthru
        _
      %p732 = scmp.le.s32.totalorder 2, %s18
      // Predicated region
      $region69: #{tpu_custom_call.1} parent=5 // pred_check
        %p733 = pneg %p732
      $region70: #{tpu_custom_call.1} parent=5 // pred_check_branch
        %735 = sbr.rel (%p733) target = $region72
      $region71: #{tpu_custom_call.1} parent=5 // pred_region
        %s736 = ssub.s32 %s18, 2
        // Predicated region
        $region73: #{tpu_custom_call.1} parent=71 // pred_check
          %p737 = pneg %p193
        $region74: #{tpu_custom_call.1} parent=71 // pred_check_branch
          %739 = sbr.rel (%p737) target = $region76
        $region75: #{tpu_custom_call.1} parent=71 // pred_region
          %s740 = sand.u32 %s178, 1
          %s741 = scalar_lea.sflag [#allocation7], %s740
          %s742 = sand.u32 %s178, 1
          %s743 = smul.addr %s742, 8
          %s744 = scalar_lea.vmem [#allocation11], %s743
          %746 = dma.done %s741, 128
        $region76: #{tpu_custom_call.1} parent=71 // pred_fallthru
          _
      $region72: #{tpu_custom_call.1} parent=5 // pred_fallthru
        _
    $region6: #{tpu_custom_call.1} parent=1 // loop_footer
      %s22 = sadd.s32 1, %s18
    $region7: #{tpu_custom_call.1} parent=1 // loop_footer_branch
      %17 = sbr.rel target = $region3
    $region8: #{tpu_custom_call.1} parent=1 // loop_exit
      _
    %747 = vsyncpa [#allocation6], 1
    %s748 = scalar_lea.sflag [#allocation6], 1
    %749 = vsyncpa %s748, 1
    %750 = vsyncpa [#allocation9], 1
    %751 = vsyncpa [#allocation7], 1
    %s752 = scalar_lea.sflag [#allocation7], 1
    %753 = vsyncpa %s752, 1

</llo_original>
